<compile_context>
chip_gen: v7x
topology: tpu7x:2x2x1
jax: 0.10.0
libtpu: 0.0.40
codegen_flags: <defaults>
</compile_context>

<pallas_src>
import jax
import jax.numpy as jnp
from jax import lax
from jax.experimental import pallas as pl
from jax.experimental.pallas import tpu as pltpu


# ----------------------------------------------------------------------------
# Kernels
# ----------------------------------------------------------------------------
def _linear_kernel(x_ref, w_ref, b_ref, o_ref):
    # x_ref: (tm, F) tokens, w_ref: (tn, F) weight rows, b_ref: (1, tn), o: (tm, tn)
    acc = lax.dot_general(
        x_ref[...], w_ref[...],
        dimension_numbers=(((1,), (1,)), ((), ())),   # contract feature dims
        preferred_element_type=jnp.float32)
    o_ref[...] = (acc + b_ref[...].astype(jnp.float32)).astype(o_ref.dtype)


def _linear_kernel_ktiled(x_ref, w_ref, b_ref, o_ref, acc_ref):
    # Same as above but with the feature dim split over grid axis 2 (reduction,
    # "arbitrary") and an f32 accumulator kept in VMEM scratch.
    k = pl.program_id(2)

    @pl.when(k == 0)
    def _():
        acc_ref[...] = jnp.zeros_like(acc_ref)

    acc_ref[...] += lax.dot_general(
        x_ref[...], w_ref[...],
        dimension_numbers=(((1,), (1,)), ((), ())),
        preferred_element_type=jnp.float32)

    @pl.when(k == pl.num_programs(2) - 1)
    def _():
        o_ref[...] = (acc_ref[...] + b_ref[...].astype(jnp.float32)).astype(o_ref.dtype)


# ----------------------------------------------------------------------------
# Sizing helpers
# ----------------------------------------------------------------------------
def _vmem_capacity_bytes():
    try:
        cap = getattr(pltpu.get_tpu_info(), "vmem_capacity_bytes", None)
        if cap:
            return int(cap)
    except Exception:
        pass
    return 64 * 1024 * 1024   # conservative: v7x per-TC VMEM


def _vmem_estimate(tm, tn, tk, itemsize, ktiled):
    # Double-buffered x / w / out blocks + bias row (+ f32 accumulator scratch).
    est = 2 * itemsize * (tm * tk + tn * tk + tm * tn + tn)
    if ktiled:
        est += 4 * tm * tn
    return est


# ----------------------------------------------------------------------------
# Wrapper
# ----------------------------------------------------------------------------
def feature_embedding(x, weight, bias, *, tm=None, tn=None, tk=None):
    """y = x @ weight.T + bias  (torch.nn.Linear semantics).

    x:      (..., features_dim)
    weight: (embed_dim, features_dim)   -- PyTorch Linear layout
    bias:   (embed_dim,)
    returns (..., embed_dim)
    """
    feat_dim = x.shape[-1]
    embed_dim = weight.shape[0]
    lead = x.shape[:-1]
    itemsize = jnp.dtype(x.dtype).itemsize
    sub = max(8, 32 // itemsize)          # dtype-aware sublane row multiple

    x2 = x.reshape(-1, feat_dim)          # free row-major view: (M, F)
    m = x2.shape[0]
    m_sub = pl.cdiv(m, sub) * sub

    vmem_phys = _vmem_capacity_bytes()
    budget = (3 * vmem_phys) // 8         # ~24 MiB on v7x, ~48 MiB on v5e/v6e
    resident_budget = vmem_phys // 5      # keep full weight resident below this

    tm_user, tn_user, tk_user = tm, tn, tk

    # ---- M tile -------------------------------------------------------------
    if tm is None:
        tm = min(512, m_sub)
    elif tm % sub != 0:
        raise ValueError(f"tm must be a multiple of {sub} for dtype {x.dtype}")

    w_bytes = embed_dim * feat_dim * itemsize
    x_bytes = m * feat_dim * itemsize

    # ---- E tile: keep the whole weight resident whenever it fits ------------
    if tn is None:
        if (2 * w_bytes <= resident_budget or embed_dim <= 512
                or embed_dim % 128 != 0):
            tn = embed_dim                # weight streamed from HBM exactly once
        else:
            tn = 512
            while embed_dim % tn != 0:
                tn //= 2                  # 512 -> 256 -> 128 (always divides)
    else:
        if embed_dim % tn != 0 or (tn != embed_dim and tn % 128 != 0):
            raise ValueError("tn must divide embed_dim and be a multiple of 128 "
                             "(or equal embed_dim)")

    # ---- K tile: prefer tiling F over collapsing tm to overhead-bound sizes -
    if tk is None:
        tk = feat_dim
        if _vmem_estimate(tm, tn, tk, itemsize, False) > budget:
            best, cand = None, 128
            while cand < feat_dim:
                if feat_dim % cand == 0 and \
                        _vmem_estimate(tm, tn, cand, itemsize, True) <= budget:
                    best = cand           # keep the largest candidate that fits
                cand += 128
            if best is not None:
                tk = best
    else:
        if feat_dim % tk != 0 or (tk != feat_dim and tk % 128 != 0):
            raise ValueError("tk must divide feat_dim and be a multiple of 128 "
                             "(or equal feat_dim)")
    ktiled = tk != feat_dim

    # ---- last-resort shrink (bounded by MXU-friendly floors) ----------------
    while _vmem_estimate(tm, tn, tk, itemsize, ktiled) > budget:
        if (tn_user is None and tn > 128 and tn % 256 == 0
                and embed_dim % (tn // 2) == 0):
            tn //= 2
        elif tm_user is None and tm > 128:
            tm = max(128, ((tm // 2) // sub) * sub)
        else:
            break

    m_tiles = pl.cdiv(m, tm)
    e_tiles = embed_dim // tn
    k_tiles = feat_dim // tk

    # ---- v7x: make sure both TensorCores get at least one parallel block ----
    if tm_user is None and m_tiles * e_tiles == 1:
        half = pl.cdiv(pl.cdiv(m, 2), sub) * sub
        if 256 <= half < tm:
            tm = half
            m_tiles = pl.cdiv(m, tm)

    # ---- grid / specs --------------------------------------------------------
    if ktiled:
        grid = (m_tiles, e_tiles, k_tiles)
        in_specs = [
            pl.BlockSpec((tm, tk), lambda i, j, k: (i, k)),
            pl.BlockSpec((tn, tk), lambda i, j, k: (j, k)),
            pl.BlockSpec((1, tn), lambda i, j, k: (0, j)),
        ]
        out_spec = pl.BlockSpec((tm, tn), lambda i, j, k: (i, j))
        scratch = [pltpu.VMEM((tm, tn), jnp.float32)]
        kernel = _linear_kernel_ktiled
        dim_sem = ("parallel", "parallel", "arbitrary")
    elif e_tiles > 1 and m_tiles > 1 and w_bytes > x_bytes:
        # Weight is the larger operand: put its axis outermost so it streams
        # from HBM exactly once; the smaller x is the one that gets re-fetched.
        grid = (e_tiles, m_tiles)
        in_specs = [
            pl.BlockSpec((tm, feat_dim), lambda j, i: (i, 0)),
            pl.BlockSpec((tn, feat_dim), lambda j, i: (j, 0)),
            pl.BlockSpec((1, tn), lambda j, i: (0, j)),
        ]
        out_spec = pl.BlockSpec((tm, tn), lambda j, i: (i, j))
        scratch = []
        kernel = _linear_kernel
        dim_sem = ("parallel", "parallel")
    else:
        grid = (m_tiles, e_tiles)
        in_specs = [
            pl.BlockSpec((tm, feat_dim), lambda i, j: (i, 0)),
            pl.BlockSpec((tn, feat_dim), lambda i, j: (j, 0)),
            pl.BlockSpec((1, tn), lambda i, j: (0, j)),
        ]
        out_spec = pl.BlockSpec((tm, tn), lambda i, j: (i, j))
        scratch = []
        kernel = _linear_kernel
        dim_sem = ("parallel", "parallel")

    est = _vmem_estimate(tm, tn, tk, itemsize, ktiled)
    vmem_limit = int(min(max(2 * est, 32 * 1024 * 1024),
                         (4 * vmem_phys) // 5))      # <= 0.8 * physical VMEM

    cost = pl.CostEstimate(
        flops=2 * m * feat_dim * embed_dim,
        transcendentals=0,
        bytes_accessed=itemsize * (m * feat_dim + embed_dim * feat_dim
                                   + embed_dim + m * embed_dim))

    out = pl.pallas_call(
        kernel,
        out_shape=jax.ShapeDtypeStruct((m, embed_dim), x.dtype),
        grid_spec=pltpu.PrefetchScalarGridSpec(
            num_scalar_prefetch=0,
            grid=grid,
            in_specs=in_specs,
            out_specs=out_spec,
            scratch_shapes=scratch),
        compiler_params=pltpu.CompilerParams(
            dimension_semantics=dim_sem,
            vmem_limit_bytes=vmem_limit),
        cost_estimate=cost,
    )(x2, weight, bias.reshape(1, embed_dim))

    return out.reshape(*lead, embed_dim)


# ----------------------------------------------------------------------------
# Self-test
# ----------------------------------------------------------------------------
if __name__ == "__main__":
    key = jax.random.PRNGKey(0)

    def make_case(k, batch, seq, features_dim, embed_dim):
        kx, kw, kb = jax.random.split(k, 3)
        bound = 1.0 / jnp.sqrt(features_dim)
        x = jax.random.normal(kx, (batch, seq, features_dim), dtype=jnp.float32)
        w = jax.random.uniform(kw, (embed_dim, features_dim),
                               minval=-bound, maxval=bound, dtype=jnp.float32)
        b = jax.random.uniform(kb, (embed_dim,),
                               minval=-bound, maxval=bound, dtype=jnp.float32)
        return x, w, b

    k1, k2, k3 = jax.random.split(key, 3)

    # Case 1: module-like small shape (single block, full weight resident).
    x, w, b = make_case(k1, 2, 8, 32, 32)
    y = jax.block_until_ready(feature_embedding(x, w, b))
    y_ref = x @ w.T + b
    assert y.shape == (2, 8, 32)
    assert jnp.allclose(y, y_ref, atol=1e-5, rtol=1e-5)

    # Case 2: partial boundary M block (no wrapper pad/slice), 2-D grid with
    # E tiling and weight-outermost grid order.
    x, w, b = make_case(k2, 2, 70, 48, 256)
    y = jax.block_until_ready(feature_embedding(x, w, b, tm=64, tn=128))
    y_ref = x @ w.T + b
    assert y.shape == (2, 70, 256)
    assert jnp.allclose(y, y_ref, atol=1e-4, rtol=1e-4)

    # Case 3: K-tiled path (f32 accumulator scratch, reduction axis last).
    x, w, b = make_case(k3, 2, 40, 256, 128)
    y = jax.block_until_ready(feature_embedding(x, w, b, tk=128))
    y_ref = x @ w.T + b
    assert y.shape == (2, 40, 128)
    assert jnp.allclose(y, y_ref, atol=1e-4, rtol=1e-4)

    print("KERNEL_OK")
</pallas_src>

<mosaic_0001>
module attributes {stable_mosaic.version = 11 : i64} {
  func.func @_linear_kernel(%arg0: i32, %arg1: i32, %arg2: memref<16x32xf32, #tpu.memory_space<vmem>>, %arg3: memref<32x32xf32, #tpu.memory_space<vmem>>, %arg4: memref<1x32xf32, #tpu.memory_space<vmem>>, %arg5: memref<16x32xf32, #tpu.memory_space<vmem>>) attributes {dimension_semantics = [#tpu.dimension_semantics<parallel>, #tpu.dimension_semantics<parallel>], iteration_bounds = array<i64: 1, 1>, scalar_prefetch = 0 : i64, scratch_operands = 0 : i64, tpu.core_type = #tpu.core_type<tc>, window_params = [{transform_indices = @transform_0, window_bounds = array<i64: 16, 32>}, {transform_indices = @transform_1, window_bounds = array<i64: 32, 32>}, {transform_indices = @transform_2, window_bounds = array<i64: 1, 32>}, {transform_indices = @transform_3, window_bounds = array<i64: 16, 32>}]} {
    %c0 = arith.constant 0 : index
    %c0_0 = arith.constant 0 : index
    %0 = vector.load %arg2[%c0, %c0_0] : memref<16x32xf32, #tpu.memory_space<vmem>>, vector<16x32xf32>
    %c0_1 = arith.constant 0 : index
    %c0_2 = arith.constant 0 : index
    %1 = vector.load %arg3[%c0_1, %c0_2] : memref<32x32xf32, #tpu.memory_space<vmem>>, vector<32x32xf32>
    %cst = arith.constant dense<0.000000e+00> : vector<16x32xf32>
    %2 = tpu.matmul %0, %1, %cst {dimension_numbers = #tpu.dot_dimension_numbers<[1], [1], [0], [0], [0, 0, 1, 0], [], []>} : vector<16x32xf32>, vector<32x32xf32>, vector<16x32xf32> -> vector<16x32xf32>
    %c0_3 = arith.constant 0 : index
    %c0_4 = arith.constant 0 : index
    %3 = vector.load %arg4[%c0_3, %c0_4] : memref<1x32xf32, #tpu.memory_space<vmem>>, vector<1x32xf32>
    %4 = vector.broadcast %3 : vector<1x32xf32> to vector<16x32xf32>
    %5 = arith.addf %2, %4 : vector<16x32xf32>
    %c0_5 = arith.constant 0 : index
    %c0_6 = arith.constant 0 : index
    %6 = vector.load %arg5[%c0_5, %c0_6] : memref<16x32xf32, #tpu.memory_space<vmem>>, vector<16x32xf32>
    tpu.vector_store %arg5[%c0_5, %c0_6], %5 {strides = array<i32>} : memref<16x32xf32, #tpu.memory_space<vmem>>, vector<16x32xf32>,
    return
  }
  func.func @transform_0(%arg0: i32, %arg1: i32) -> (i32, i32) {
    %c0_i32 = arith.constant 0 : i32
    %c0_i32_0 = arith.constant 0 : i32
    return %arg0, %c0_i32 : i32, i32
  }
  func.func @transform_1(%arg0: i32, %arg1: i32) -> (i32, i32) {
    %c0_i32 = arith.constant 0 : i32
    %c0_i32_0 = arith.constant 0 : i32
    return %arg1, %c0_i32 : i32, i32
  }
  func.func @transform_2(%arg0: i32, %arg1: i32) -> (i32, i32) {
    %c0_i32 = arith.constant 0 : i32
    %c0_i32_0 = arith.constant 0 : i32
    return %c0_i32, %arg1 : i32, i32
  }
  func.func @transform_3(%arg0: i32, %arg1: i32) -> (i32, i32) {
    %c0_i32 = arith.constant 0 : i32
    return %arg0, %arg1 : i32, i32
  }
}

</mosaic_0001>

<llo_original>
// kernel: tpu_custom_call.1
$region0: #{tpu_custom_call.1}
  #allocation0 [shape = 'u32[]', space=smem, size = 0x4, offset = 0x4, fixed_abs, tag = 'smem constant byte address 0x4 - core index']
  #allocation1 [shape = 'u32[144,128]{1,0:T(1,128)}', space=vmem, size = 0x12000, scoped, tag = 'internal scratch']
  %s0 = inlined_call_operand.hbm [shape: f32[16,32], index: 0, kind: input, shape index: {}]
  %s1 = inlined_call_operand.hbm [shape: f32[32,32], index: 1, kind: input, shape index: {}]
  %s2 = inlined_call_operand.vmem [shape: f32[1,32], index: 2, kind: input, shape index: {}]
  %s3 = inlined_call_operand.hbm [shape: f32[16,32], index: 3, kind: output, shape index: {}]
  %s4 = sld [smem:[#allocation0]]
  $region30: #{tpu_custom_call.1} parent=0
    _
  %s6 = ssub.s32 1, %s4
  %s7 = scalar_select 0, %s6, %s4
  $region1: #{tpu_custom_call.1} parent=0
    #allocation2 [shape = 'u8[8192]{0}', space=vmem, size = 0x2000, scoped, tag = 'input window, operand 0, single buffered']
    #allocation3 [shape = 's32[1]{0}', space=sflag, size = 0x4, scoped, tag = 'scoped memory for tpu_custom_call.1']
    #allocation4 [shape = 's32[1]{0}', space=sflag, size = 0x4, scoped, tag = 'scoped memory for tpu_custom_call.1']
    #allocation5 [shape = 'u8[16384]{0}', space=vmem, size = 0x4000, scoped, tag = 'input window, operand 1, single buffered']
    #allocation6 [shape = 's32[1]{0}', space=sflag, size = 0x4, scoped, tag = 'scoped memory for tpu_custom_call.1']
    #allocation7 [shape = 'u8[8192]{0}', space=vmem, size = 0x2000, scoped, tag = 'output window, operand 0, single buffered']
    %8 = vsyncpa [#allocation3], 0
    %9 = vsyncpa [#allocation6], 0
    %10 = vsyncpa [#allocation4], 0
    // Predicated region
    $region2: #{tpu_custom_call.1} parent=1 // pred_check
      _
    $region3: #{tpu_custom_call.1} parent=1 // pred_check_branch
      %12 = sbr.rel (0) target = $region5
    $region4: #{tpu_custom_call.1} parent=1 // pred_region
      %s14 = ssub.s32 256, 256
      %15 = vsyncadd [#allocation3], %s14
      %s16 = sshll.u32 [#allocation2], 4
      %s17 = int_to_ptr.vmem [resolvable:$true] %s16
      %22 = dma.hbm_to_vmem [thread:$0]  %s0, 256, %s17, [#allocation3], 128, 128, 8
    $region5: #{tpu_custom_call.1} parent=1 // pred_fallthru
      _
    // Predicated region
    $region6: #{tpu_custom_call.1} parent=1 // pred_check
      _
    $region7: #{tpu_custom_call.1} parent=1 // pred_check_branch
      %24 = sbr.rel (0) target = $region9
    $region8: #{tpu_custom_call.1} parent=1 // pred_region
      %s26 = ssub.s32 512, 512
      %27 = vsyncadd [#allocation6], %s26
      %s28 = sshll.u32 [#allocation5], 4
      %s29 = int_to_ptr.vmem [resolvable:$true] %s28
      %34 = dma.hbm_to_vmem [thread:$0]  %s1, 512, %s29, [#allocation6], 128, 128, 8
    $region9: #{tpu_custom_call.1} parent=1 // pred_fallthru
      _
    // Predicated region
    $region10: #{tpu_custom_call.1} parent=1 // pred_check
      _
    $region11: #{tpu_custom_call.1} parent=1 // pred_check_branch
      %36 = sbr.rel (0) target = $region13
    $region12: #{tpu_custom_call.1} parent=1 // pred_region
      _
    $region13: #{tpu_custom_call.1} parent=1 // pred_fallthru
      _
    // Predicated region
    $region14: #{tpu_custom_call.1} parent=1 // pred_check
      _
    $region15: #{tpu_custom_call.1} parent=1 // pred_check_branch
      %38 = sbr.rel (0) target = $region17
    $region16: #{tpu_custom_call.1} parent=1 // pred_region
      %39 = dma.done [#allocation3], 256
    $region17: #{tpu_custom_call.1} parent=1 // pred_fallthru
      _
    // Predicated region
    $region18: #{tpu_custom_call.1} parent=1 // pred_check
      _
    $region19: #{tpu_custom_call.1} parent=1 // pred_check_branch
      %41 = sbr.rel (0) target = $region21
    $region20: #{tpu_custom_call.1} parent=1 // pred_region
      %42 = dma.done [#allocation6], 512
    $region21: #{tpu_custom_call.1} parent=1 // pred_fallthru
      _
    %v43 = vld [vmem:[#allocation2] sm:$0xff]
    %v44 = vld [vmem:[#allocation2 + $0x8] sm:$0xff]
    %v45 = vld [vmem:[#allocation5] sm:$0xff]
    %v46 = vld [vmem:[#allocation5 + $0x8] sm:$0xff]
    %v47 = vld [vmem:[#allocation5 + $0x10] sm:$0xff]
    %v48 = vld [vmem:[#allocation5 + $0x18] sm:$0xff]
    %v49 = vld [vmem:[%s2] sm:$0x1]
    %v51 = vlaneseq
    %v52 = vshrl.u32 %v51, 7
    %v53 = vsub.s32 0, %v52
    %v54 = vrot.slane %v49, %v53
    %vm56 = vcmask 261120
    %v58 = vsel %vm56, %v43, 0
    %v61 = vsel %vm56, %v44, 0
    %v64 = vsel %vm56, %v45, 0
    %v67 = vsel %vm56, %v46, 0
    %v70 = vsel %vm56, %v47, 0
    %v73 = vsel %vm56, %v48, 0
    %75 = vmatprep.subr.mxu0 0.0
    %76 = vmatpush1.xpose.msra.mxu0 %v64
    %77 = vmatprep.subr.mxu0 0.0
    %78 = vmatpush1.xpose.msra.mxu0 %v67
    %79 = vmatprep.subr.mxu0 0.0
    %80 = vmatpush1.xpose.msra.mxu0 %v70
    %81 = vmatprep.subr.mxu0 0.0
    %82 = vmatpush1.xpose.msra.mxu0 %v73
    %83 = vmatprep.subr.mxu0 0.0
    %84 = vmatpush1.xpose.msra.mxu0 0.0
    %85 = vmatprep.subr.mxu0 0.0
    %86 = vmatpush1.xpose.msra.mxu0 0.0
    %87 = vmatprep.subr.mxu0 0.0
    %88 = vmatpush1.xpose.msra.mxu0 0.0
    %89 = vmatprep.subr.mxu0 0.0
    %90 = vmatpush1.xpose.msra.mxu0 0.0
    %91 = vmatprep.subr.mxu0 0.0
    %92 = vmatpush1.xpose.msra.mxu0 0.0
    %93 = vmatprep.subr.mxu0 0.0
    %94 = vmatpush1.xpose.msra.mxu0 0.0
    %95 = vmatprep.subr.mxu0 0.0
    %96 = vmatpush1.xpose.msra.mxu0 0.0
    %97 = vmatprep.subr.mxu0 0.0
    %98 = vmatpush1.xpose.msra.mxu0 0.0
    %99 = vmatprep.subr.mxu0 0.0
    %100 = vmatpush1.xpose.msra.mxu0 0.0
    %101 = vmatprep.subr.mxu0 0.0
    %102 = vmatpush1.xpose.msra.mxu0 0.0
    %103 = vmatprep.subr.mxu0 0.0
    %104 = vmatpush1.xpose.msra.mxu0 0.0
    %105 = vmatprep.subr.mxu0 0.0
    %106 = vmatpush1.xpose.msra.mxu0 0.0
    %107 = vmatprep.subr.mxu0 0.0
    %108 = vmatpush1.xpose.msra.mxu0 0.0
    %109 = vmatprep.subr.mxu0 0.0
    %110 = vmatpush1.xpose.msra.mxu0 0.0
    %111 = vmatprep.subr.mxu0 0.0
    %112 = vmatpush1.xpose.msra.mxu0 0.0
    %113 = vmatprep.subr.mxu0 0.0
    %114 = vmatpush1.xpose.msra.mxu0 0.0
    %115 = vmatprep.subr.mxu0 0.0
    %116 = vmatpush1.xpose.msra.mxu0 0.0
    %117 = vmatprep.subr.mxu0 0.0
    %118 = vmatpush1.xpose.msra.mxu0 0.0
    %119 = vmatprep.subr.mxu0 0.0
    %120 = vmatpush1.xpose.msra.mxu0 0.0
    %121 = vmatprep.subr.mxu0 0.0
    %122 = vmatpush1.xpose.msra.mxu0 0.0
    %123 = vmatprep.subr.mxu0 0.0
    %124 = vmatpush1.xpose.msra.mxu0 0.0
    %125 = vmatprep.subr.mxu0 0.0
    %126 = vmatpush1.xpose.msra.mxu0 0.0
    %127 = vmatprep.subr.mxu0 0.0
    %128 = vmatpush1.xpose.msra.mxu0 0.0
    %129 = vmatprep.subr.mxu0 0.0
    %130 = vmatpush1.xpose.msra.mxu0 0.0
    %131 = vmatprep.subr.mxu0 0.0
    %132 = vmatpush1.xpose.msra.mxu0 0.0
    %133 = vmatprep.subr.mxu0 0.0
    %134 = vmatpush1.xpose.msra.mxu0 0.0
    %135 = vmatprep.subr.mxu0 0.0
    %136 = vmatpush1.xpose.msra.mxu0 0.0
    %137 = vmatprep.subr.mxu0 0.0
    %138 = vmatpush1.xpose.msra.mxu0 0.0
    %139 = vmatprep.mubr.f32.mxu0 0.0
    %140 = vmatmul.mubr.f32.gmra.mrb[0].mxu0 %v58
    %v141 = vpop.f32.mrb[0].mxu0
    %v142 = vadd.f32 %v54, %v141
    %v143 = vpop.f32.mrb[0].mxu0
    %144 = vmatprep.mubr.f32.mxu0 0.0
    %145 = vmatmul.mubr.f32.gmra.mrb[0].mxu0 %v61
    %v146 = vpop.f32.mrb[0].mxu0
    %v147 = vadd.f32 %v54, %v146
    %v148 = vpop.f32.mrb[0].mxu0
    %149 = vdwg.mxu0
    %150 = vst.msk [vmem:[#allocation7] sm:$0xff] %vm56, %v142
    %151 = vst.msk [vmem:[#allocation7 + $0x8] sm:$0xff] %vm56, %v147
    // Predicated region
    $region22: #{tpu_custom_call.1} parent=1 // pred_check
      _
    $region23: #{tpu_custom_call.1} parent=1 // pred_check_branch
      %153 = sbr.rel (0) target = $region25
    $region24: #{tpu_custom_call.1} parent=1 // pred_region
      %s155 = ssub.s32 256, 256
      %156 = vsyncadd [#allocation4], %s155
      %s157 = sshll.u32 [#allocation7], 4
      %s158 = int_to_ptr.vmem [resolvable:$true] %s157
      %163 = dma.vmem_to_hbm [thread:$0]  %s158, 256, %s3, [#allocation4], 128, 128, 8
    $region25: #{tpu_custom_call.1} parent=1 // pred_fallthru
      _
    // Predicated region
    $region26: #{tpu_custom_call.1} parent=1 // pred_check
      _
    $region27: #{tpu_custom_call.1} parent=1 // pred_check_branch
      %165 = sbr.rel (0) target = $region29
    $region28: #{tpu_custom_call.1} parent=1 // pred_region
      %166 = dma.done [#allocation4], 256
    $region29: #{tpu_custom_call.1} parent=1 // pred_fallthru
      _
    %167 = vsyncpa [#allocation3], 1
    %168 = vsyncpa [#allocation6], 1
    %169 = vsyncpa [#allocation4], 1

</llo_original>
